<compile_context>
chip_gen: v7x
topology: tpu7x:2x2x1
jax: 0.10.0
libtpu: 0.0.40
codegen_flags: <defaults>
</compile_context>

<pallas_src>
import jax
import jax.numpy as jnp
from jax import lax
from jax.experimental import pallas as pl
from jax.experimental.pallas import tpu as pltpu

EPS = 1e-5
NEG_SLOPE = 0.2


def _vmem_capacity_bytes():
    try:
        return int(getattr(pltpu.get_tpu_info(), "vmem_capacity_bytes"))
    except Exception:
        return 128 << 20  # v5e / v6e default


def _prep_inputs(x, weight, ho, wo):
    """Host-side restructuring (no 4x im2col amplification).

    x (N, C, H, W) f32 -> xc (N, 2, 4*C, (Ho+1)*Wo) bf16 with
        xc[n, b, (2r+s)*C + c, u*Wo + v] = xpad[n, c, 2u + r, 2(v+b) + s]
    weight (Cout, C, 4, 4) -> w (2, 2, Cout, 4*C) bf16 with
        w[a, b, co, (2r+s)*C + c] = weight[co, c, 2a + r, 2b + s]
    so that for tap group (a, b):
        out[co, i*Wo + j] += (w[a, b] @ xc[n, b, :, a*Wo : a*Wo + Ho*Wo])[co, i*Wo + j]
    """
    n, c_in, _, _ = x.shape
    c_out = weight.shape[0]

    xp = jnp.pad(x.astype(jnp.bfloat16), ((0, 0), (0, 0), (1, 1), (1, 1)))
    xr = xp.reshape(n, c_in, ho + 1, 2, wo + 1, 2)        # (n, c, u, r, v, s)
    xr = xr.transpose(0, 3, 5, 1, 2, 4)                   # (n, r, s, c, u, v)
    xr = xr.reshape(n, 4 * c_in, ho + 1, wo + 1)          # rows = (2r+s)*C + c
    xc = jnp.stack([xr[..., 0:wo], xr[..., 1:wo + 1]], axis=1)  # (n, 2, 4C, Ho+1, Wo)
    xc = xc.reshape(n, 2, 4 * c_in, (ho + 1) * wo)

    w6 = weight.reshape(c_out, c_in, 2, 2, 2, 2)          # (co, c, a, r, b, s)
    w6 = w6.transpose(2, 4, 0, 3, 5, 1)                   # (a, b, co, r, s, c)
    w_arr = w6.reshape(2, 2, c_out, 4 * c_in).astype(jnp.bfloat16)
    return xc, w_arr


def unet_down(x, weight):
    """x: (N, C_in, H, W) f32, weight: (C_out, C_in, 4, 4) f32.
    Returns (N, C_out, H//2, W//2) f32 (UNetDown.forward semantics)."""
    n, c_in, h, w_sz = x.shape
    c_out = weight.shape[0]
    if h % 2 or w_sz % 2:
        raise ValueError("UNetDown (k=4, s=2, p=1) expects even H and W.")
    ho, wo = h // 2, w_sz // 2
    hwo = ho * wo
    k4 = 4 * c_in

    xc, w_arr = _prep_inputs(x, weight, ho, wo)

    # Cout blocking: keep blocks >= 256 where possible (MXU M on v6e/v7x);
    # instance-norm stats are per channel, so the split is exact.
    co_blk = 256 if (c_out % 256 == 0) else c_out
    n_co = c_out // co_blk

    # Single-buffer the weight only when its block index is constant across
    # the grid and it is big enough for the saved buffer to matter (keeps the
    # tiny demo shapes on the plain, battle-tested spec path).
    w_bytes = 2 * 2 * c_out * k4 * 2
    single_buf_w = (n_co == 1) and (w_bytes >= (1 << 20))

    def kernel(w_ref, x_ref, o_ref):
        # w_ref: (2, 2, co_blk, 4C) bf16   x_ref: (1, 2, 4C, (Ho+1)*Wo) bf16
        # o_ref: (1, co_blk, HWo) f32
        #
        # Conv as 4 shifted MXU matmuls (taps grouped by output-pixel parity),
        # bf16 operands, f32 accumulation directly in the output block.
        for a in range(2):
            for b in range(2):
                contrib = jnp.dot(
                    w_ref[a, b],
                    x_ref[0, b, :, a * wo:a * wo + hwo],
                    preferred_element_type=jnp.float32)
                if a == 0 and b == 0:
                    o_ref[0] = contrib
                else:
                    o_ref[0] += contrib

        # InstanceNorm2d (biased variance, eps=1e-5, no affine): per-channel
        # stats over the spatial (lane) axis, two-pass centered variance for
        # numerical robustness.  LeakyReLU(0.2).  dropout=0.0 -> no-op.
        y = o_ref[0]
        mean = jnp.mean(y, axis=1, keepdims=True)
        yc = y - mean
        var = jnp.mean(yc * yc, axis=1, keepdims=True)
        y_n = yc * lax.rsqrt(var + EPS)
        o_ref[0] = jnp.where(y_n > 0, y_n, NEG_SLOPE * y_n)

    w_block = (2, 2, co_blk, k4)
    w_imap = lambda bi, ci: (0, 0, ci, 0)
    if single_buf_w:
        w_spec = pl.BlockSpec(w_block, w_imap, pipeline_mode=pl.Buffered(1))
    else:
        w_spec = pl.BlockSpec(w_block, w_imap)

    # x block index depends only on the batch axis -> stays resident (no
    # re-DMA) across the inner cout axis.
    x_spec = pl.BlockSpec((1, 2, k4, (ho + 1) * wo), lambda bi, ci: (bi, 0, 0, 0))
    o_spec = pl.BlockSpec((1, co_blk, hwo), lambda bi, ci: (bi, ci, 0))

    # VMEM budget: double-buffered x and out blocks, weight block(s), headroom.
    x_blk_bytes = 2 * k4 * (ho + 1) * wo * 2
    w_blk_bytes = 2 * 2 * co_blk * k4 * 2
    o_blk_bytes = co_blk * hwo * 4
    need = (2 * x_blk_bytes
            + (1 if single_buf_w else 2) * w_blk_bytes
            + 2 * o_blk_bytes)
    cap = max(min(_vmem_capacity_bytes() - (16 << 20), 100 << 20), 32 << 20)
    vmem_limit = int(min(max(32 << 20, 2 * need), cap))

    out = pl.pallas_call(
        kernel,
        out_shape=jax.ShapeDtypeStruct((n, c_out, hwo), jnp.float32),
        grid_spec=pltpu.PrefetchScalarGridSpec(
            num_scalar_prefetch=0,
            grid=(n, n_co),
            in_specs=[w_spec, x_spec],
            out_specs=o_spec,
        ),
        compiler_params=pltpu.CompilerParams(
            dimension_semantics=("parallel", "parallel"),
            vmem_limit_bytes=vmem_limit),
    )(w_arr, xc)                                           # (N, Cout, HWo)

    # TODO(synk): for deep layers with HWo < 128, pack several batch elements
    # onto the lane axis (lane-dense stores, fuller MXU N) with per-image
    # stats; needs a post-kernel (N//B, Cout, B, Ho, Wo) -> NCHW transpose.
    # TODO(synk): emit bf16 output when the consuming layer is bf16 (halves
    # output HBM writes / store-slot pressure; mainly a v5e win).
    return out.reshape(n, c_out, ho, wo)    # contiguous reshape, no transpose


def _reference(x, weight):
    """Pure-JAX f32 reference (conv + instance norm + leaky relu)."""
    y = lax.conv_general_dilated(
        x, weight, window_strides=(2, 2), padding=((1, 1), (1, 1)),
        dimension_numbers=("NCHW", "OIHW", "NCHW"))
    mean = jnp.mean(y, axis=(2, 3), keepdims=True)
    var = jnp.mean((y - mean) ** 2, axis=(2, 3), keepdims=True)
    y = (y - mean) / jnp.sqrt(var + EPS)
    return jnp.where(y > 0, y, NEG_SLOPE * y)


if __name__ == "__main__":
    key = jax.random.PRNGKey(0)
    k_x, k_w = jax.random.split(key)

    N, C_IN, H, W = 2, 4, 16, 16
    C_OUT = 8

    x = jax.random.normal(k_x, (N, C_IN, H, W), dtype=jnp.float32)
    # Deterministic weight init (Conv2d weight shape (C_out, C_in, 4, 4)).
    fan_in = C_IN * 4 * 4
    bound = 1.0 / (fan_in ** 0.5)
    weight = jax.random.uniform(k_w, (C_OUT, C_IN, 4, 4), dtype=jnp.float32,
                                minval=-bound, maxval=bound)

    out = jax.block_until_ready(jax.jit(unet_down)(x, weight))
    assert out.shape == (N, C_OUT, H // 2, W // 2)

    # Validate against an f32 reference fed the same bf16-rounded operands:
    # the kernel's only low-precision step is the bf16 MXU inputs -- the conv
    # accumulates in f32 and the norm/activation math is entirely f32.
    x_r = x.astype(jnp.bfloat16).astype(jnp.float32)
    w_r = weight.astype(jnp.bfloat16).astype(jnp.float32)
    ref = jax.block_until_ready(_reference(x_r, w_r))
    assert jnp.allclose(out, ref, atol=5e-3, rtol=5e-3), float(
        jnp.max(jnp.abs(out - ref)))

    print("KERNEL_OK")
</pallas_src>

<mosaic_0001>
module attributes {stable_mosaic.version = 11 : i64} {
  func.func @kernel(%arg0: i32, %arg1: i32, %arg2: memref<2x2x8x16xbf16, #tpu.memory_space<vmem>>, %arg3: memref<1x2x16x72xbf16, #tpu.memory_space<vmem>>, %arg4: memref<1x8x64xf32, #tpu.memory_space<vmem>>) attributes {dimension_semantics = [#tpu.dimension_semantics<parallel>, #tpu.dimension_semantics<parallel>], iteration_bounds = array<i64: 2, 1>, scalar_prefetch = 0 : i64, scratch_operands = 0 : i64, tpu.core_type = #tpu.core_type<tc>, window_params = [{transform_indices = @transform_0, window_bounds = array<i64: 2, 2, 8, 16>}, {transform_indices = @transform_1, window_bounds = array<i64: 1, 2, 16, 72>}, {transform_indices = @transform_2, window_bounds = array<i64: 1, 8, 64>}]} {
    %c0 = arith.constant 0 : index
    %c0_0 = arith.constant 0 : index
    %c0_1 = arith.constant 0 : index
    %c0_2 = arith.constant 0 : index
    %0 = vector.load %arg2[%c0, %c0_0, %c0_1, %c0_2] : memref<2x2x8x16xbf16, #tpu.memory_space<vmem>>, vector<1x1x8x16xbf16>
    %1 = vector.shape_cast %0 : vector<1x1x8x16xbf16> to vector<8x16xbf16>
    %c0_3 = arith.constant 0 : index
    %c0_4 = arith.constant 0 : index
    %c0_5 = arith.constant 0 : index
    %c0_6 = arith.constant 0 : index
    %2 = vector.load %arg3[%c0_3, %c0_4, %c0_5, %c0_6] : memref<1x2x16x72xbf16, #tpu.memory_space<vmem>>, vector<1x1x16x64xbf16>
    %3 = vector.shape_cast %2 : vector<1x1x16x64xbf16> to vector<16x64xbf16>
    %cst = arith.constant dense<0.000000e+00> : vector<8x64xf32>
    %4 = tpu.matmul %1, %3, %cst {dimension_numbers = #tpu.dot_dimension_numbers<[1], [0], [0], [1], [0, 0, 1, 1], [], []>} : vector<8x16xbf16>, vector<16x64xbf16>, vector<8x64xf32> -> vector<8x64xf32>
    %c0_7 = arith.constant 0 : index
    %c0_8 = arith.constant 0 : index
    %c0_9 = arith.constant 0 : index
    %5 = vector.load %arg4[%c0_7, %c0_8, %c0_9] : memref<1x8x64xf32, #tpu.memory_space<vmem>>, vector<1x8x64xf32>
    %6 = vector.shape_cast %5 : vector<1x8x64xf32> to vector<8x64xf32>
    %7 = vector.shape_cast %4 : vector<8x64xf32> to vector<1x8x64xf32>
    tpu.vector_store %arg4[%c0_7, %c0_8, %c0_9], %7 {strides = array<i32>} : memref<1x8x64xf32, #tpu.memory_space<vmem>>, vector<1x8x64xf32>,
    %c0_10 = arith.constant 0 : index
    %c1 = arith.constant 1 : index
    %c0_11 = arith.constant 0 : index
    %c0_12 = arith.constant 0 : index
    %8 = vector.load %arg2[%c0_10, %c1, %c0_11, %c0_12] : memref<2x2x8x16xbf16, #tpu.memory_space<vmem>>, vector<1x1x8x16xbf16>
    %9 = vector.shape_cast %8 : vector<1x1x8x16xbf16> to vector<8x16xbf16>
    %c0_13 = arith.constant 0 : index
    %c1_14 = arith.constant 1 : index
    %c0_15 = arith.constant 0 : index
    %c0_16 = arith.constant 0 : index
    %10 = vector.load %arg3[%c0_13, %c1_14, %c0_15, %c0_16] : memref<1x2x16x72xbf16, #tpu.memory_space<vmem>>, vector<1x1x16x64xbf16>
    %11 = vector.shape_cast %10 : vector<1x1x16x64xbf16> to vector<16x64xbf16>
    %cst_17 = arith.constant dense<0.000000e+00> : vector<8x64xf32>
    %12 = tpu.matmul %9, %11, %cst_17 {dimension_numbers = #tpu.dot_dimension_numbers<[1], [0], [0], [1], [0, 0, 1, 1], [], []>} : vector<8x16xbf16>, vector<16x64xbf16>, vector<8x64xf32> -> vector<8x64xf32>
    %c0_18 = arith.constant 0 : index
    %c0_19 = arith.constant 0 : index
    %c0_20 = arith.constant 0 : index
    %13 = vector.load %arg4[%c0_18, %c0_19, %c0_20] : memref<1x8x64xf32, #tpu.memory_space<vmem>>, vector<1x8x64xf32>
    %14 = vector.shape_cast %13 : vector<1x8x64xf32> to vector<8x64xf32>
    %15 = arith.addf %14, %12 : vector<8x64xf32>
    %c0_21 = arith.constant 0 : index
    %c0_22 = arith.constant 0 : index
    %c0_23 = arith.constant 0 : index
    %16 = vector.load %arg4[%c0_21, %c0_22, %c0_23] : memref<1x8x64xf32, #tpu.memory_space<vmem>>, vector<1x8x64xf32>
    %17 = vector.shape_cast %16 : vector<1x8x64xf32> to vector<8x64xf32>
    %18 = vector.shape_cast %15 : vector<8x64xf32> to vector<1x8x64xf32>
    tpu.vector_store %arg4[%c0_21, %c0_22, %c0_23], %18 {strides = array<i32>} : memref<1x8x64xf32, #tpu.memory_space<vmem>>, vector<1x8x64xf32>,
    %c1_24 = arith.constant 1 : index
    %c0_25 = arith.constant 0 : index
    %c0_26 = arith.constant 0 : index
    %c0_27 = arith.constant 0 : index
    %19 = vector.load %arg2[%c1_24, %c0_25, %c0_26, %c0_27] : memref<2x2x8x16xbf16, #tpu.memory_space<vmem>>, vector<1x1x8x16xbf16>
    %20 = vector.shape_cast %19 : vector<1x1x8x16xbf16> to vector<8x16xbf16>
    %c0_28 = arith.constant 0 : index
    %c0_29 = arith.constant 0 : index
    %c0_30 = arith.constant 0 : index
    %c8 = arith.constant 8 : index
    %21 = vector.load %arg3[%c0_28, %c0_29, %c0_30, %c8] : memref<1x2x16x72xbf16, #tpu.memory_space<vmem>>, vector<1x1x16x64xbf16>
    %22 = vector.shape_cast %21 : vector<1x1x16x64xbf16> to vector<16x64xbf16>
    %cst_31 = arith.constant dense<0.000000e+00> : vector<8x64xf32>
    %23 = tpu.matmul %20, %22, %cst_31 {dimension_numbers = #tpu.dot_dimension_numbers<[1], [0], [0], [1], [0, 0, 1, 1], [], []>} : vector<8x16xbf16>, vector<16x64xbf16>, vector<8x64xf32> -> vector<8x64xf32>
    %c0_32 = arith.constant 0 : index
    %c0_33 = arith.constant 0 : index
    %c0_34 = arith.constant 0 : index
    %24 = vector.load %arg4[%c0_32, %c0_33, %c0_34] : memref<1x8x64xf32, #tpu.memory_space<vmem>>, vector<1x8x64xf32>
    %25 = vector.shape_cast %24 : vector<1x8x64xf32> to vector<8x64xf32>
    %26 = arith.addf %25, %23 : vector<8x64xf32>
    %c0_35 = arith.constant 0 : index
    %c0_36 = arith.constant 0 : index
    %c0_37 = arith.constant 0 : index
    %27 = vector.load %arg4[%c0_35, %c0_36, %c0_37] : memref<1x8x64xf32, #tpu.memory_space<vmem>>, vector<1x8x64xf32>
    %28 = vector.shape_cast %27 : vector<1x8x64xf32> to vector<8x64xf32>
    %29 = vector.shape_cast %26 : vector<8x64xf32> to vector<1x8x64xf32>
    tpu.vector_store %arg4[%c0_35, %c0_36, %c0_37], %29 {strides = array<i32>} : memref<1x8x64xf32, #tpu.memory_space<vmem>>, vector<1x8x64xf32>,
    %c1_38 = arith.constant 1 : index
    %c1_39 = arith.constant 1 : index
    %c0_40 = arith.constant 0 : index
    %c0_41 = arith.constant 0 : index
    %30 = vector.load %arg2[%c1_38, %c1_39, %c0_40, %c0_41] : memref<2x2x8x16xbf16, #tpu.memory_space<vmem>>, vector<1x1x8x16xbf16>
    %31 = vector.shape_cast %30 : vector<1x1x8x16xbf16> to vector<8x16xbf16>
    %c0_42 = arith.constant 0 : index
    %c1_43 = arith.constant 1 : index
    %c0_44 = arith.constant 0 : index
    %c8_45 = arith.constant 8 : index
    %32 = vector.load %arg3[%c0_42, %c1_43, %c0_44, %c8_45] : memref<1x2x16x72xbf16, #tpu.memory_space<vmem>>, vector<1x1x16x64xbf16>
    %33 = vector.shape_cast %32 : vector<1x1x16x64xbf16> to vector<16x64xbf16>
    %cst_46 = arith.constant dense<0.000000e+00> : vector<8x64xf32>
    %34 = tpu.matmul %31, %33, %cst_46 {dimension_numbers = #tpu.dot_dimension_numbers<[1], [0], [0], [1], [0, 0, 1, 1], [], []>} : vector<8x16xbf16>, vector<16x64xbf16>, vector<8x64xf32> -> vector<8x64xf32>
    %c0_47 = arith.constant 0 : index
    %c0_48 = arith.constant 0 : index
    %c0_49 = arith.constant 0 : index
    %35 = vector.load %arg4[%c0_47, %c0_48, %c0_49] : memref<1x8x64xf32, #tpu.memory_space<vmem>>, vector<1x8x64xf32>
    %36 = vector.shape_cast %35 : vector<1x8x64xf32> to vector<8x64xf32>
    %37 = arith.addf %36, %34 : vector<8x64xf32>
    %c0_50 = arith.constant 0 : index
    %c0_51 = arith.constant 0 : index
    %c0_52 = arith.constant 0 : index
    %38 = vector.load %arg4[%c0_50, %c0_51, %c0_52] : memref<1x8x64xf32, #tpu.memory_space<vmem>>, vector<1x8x64xf32>
    %39 = vector.shape_cast %38 : vector<1x8x64xf32> to vector<8x64xf32>
    %40 = vector.shape_cast %37 : vector<8x64xf32> to vector<1x8x64xf32>
    tpu.vector_store %arg4[%c0_50, %c0_51, %c0_52], %40 {strides = array<i32>} : memref<1x8x64xf32, #tpu.memory_space<vmem>>, vector<1x8x64xf32>,
    %c0_53 = arith.constant 0 : index
    %c0_54 = arith.constant 0 : index
    %c0_55 = arith.constant 0 : index
    %41 = vector.load %arg4[%c0_53, %c0_54, %c0_55] : memref<1x8x64xf32, #tpu.memory_space<vmem>>, vector<1x8x64xf32>
    %42 = vector.shape_cast %41 : vector<1x8x64xf32> to vector<8x64xf32>
    %cst_56 = arith.constant dense<0.000000e+00> : vector<8xf32>
    %43 = vector.multi_reduction <add>, %42, %cst_56 [1] : vector<8x64xf32> to vector<8xf32>
    %44 = vector.shape_cast %43 : vector<8xf32> to vector<8x1xf32>
    %cst_57 = arith.constant 6.400000e+01 : f32
    %45 = vector.broadcast %cst_57 : f32 to vector<8x1xf32>
    %46 = arith.divf %44, %45 : vector<8x1xf32>
    %47 = vector.broadcast %46 : vector<8x1xf32> to vector<8x64xf32>
    %48 = arith.subf %42, %47 : vector<8x64xf32>
    %49 = arith.mulf %48, %48 : vector<8x64xf32>
    %cst_58 = arith.constant dense<0.000000e+00> : vector<8xf32>
    %50 = vector.multi_reduction <add>, %49, %cst_58 [1] : vector<8x64xf32> to vector<8xf32>
    %51 = vector.shape_cast %50 : vector<8xf32> to vector<8x1xf32>
    %cst_59 = arith.constant 6.400000e+01 : f32
    %52 = vector.broadcast %cst_59 : f32 to vector<8x1xf32>
    %53 = arith.divf %51, %52 : vector<8x1xf32>
    %cst_60 = arith.constant 9.99999974E-6 : f32
    %54 = vector.broadcast %cst_60 : f32 to vector<8x1xf32>
    %55 = arith.addf %53, %54 : vector<8x1xf32>
    %56 = math.rsqrt %55 : vector<8x1xf32>
    %57 = vector.broadcast %56 : vector<8x1xf32> to vector<8x64xf32>
    %58 = arith.mulf %48, %57 : vector<8x64xf32>
    %cst_61 = arith.constant 0.000000e+00 : f32
    %59 = vector.broadcast %cst_61 : f32 to vector<8x64xf32>
    %60 = arith.cmpf ogt, %58, %59 : vector<8x64xf32>
    %cst_62 = arith.constant 2.000000e-01 : f32
    %61 = vector.broadcast %cst_62 : f32 to vector<8x64xf32>
    %62 = arith.mulf %61, %58 : vector<8x64xf32>
    %63 = arith.select %60, %58, %62 : vector<8x64xi1>, vector<8x64xf32>
    %c0_63 = arith.constant 0 : index
    %c0_64 = arith.constant 0 : index
    %c0_65 = arith.constant 0 : index
    %64 = vector.load %arg4[%c0_63, %c0_64, %c0_65] : memref<1x8x64xf32, #tpu.memory_space<vmem>>, vector<1x8x64xf32>
    %65 = vector.shape_cast %64 : vector<1x8x64xf32> to vector<8x64xf32>
    %66 = vector.shape_cast %63 : vector<8x64xf32> to vector<1x8x64xf32>
    tpu.vector_store %arg4[%c0_63, %c0_64, %c0_65], %66 {strides = array<i32>} : memref<1x8x64xf32, #tpu.memory_space<vmem>>, vector<1x8x64xf32>,
    return
  }
  func.func @transform_0(%arg0: i32, %arg1: i32) -> (i32, i32, i32, i32) {
    %c0_i32 = arith.constant 0 : i32
    %c0_i32_0 = arith.constant 0 : i32
    %c0_i32_1 = arith.constant 0 : i32
    %c0_i32_2 = arith.constant 0 : i32
    return %c0_i32, %c0_i32_0, %arg1, %c0_i32_1 : i32, i32, i32, i32
  }
  func.func @transform_1(%arg0: i32, %arg1: i32) -> (i32, i32, i32, i32) {
    %c0_i32 = arith.constant 0 : i32
    %c0_i32_0 = arith.constant 0 : i32
    %c0_i32_1 = arith.constant 0 : i32
    %c0_i32_2 = arith.constant 0 : i32
    return %arg0, %c0_i32, %c0_i32_0, %c0_i32_1 : i32, i32, i32, i32
  }
  func.func @transform_2(%arg0: i32, %arg1: i32) -> (i32, i32, i32) {
    %c0_i32 = arith.constant 0 : i32
    %c0_i32_0 = arith.constant 0 : i32
    return %arg0, %arg1, %c0_i32 : i32, i32, i32
  }
}

</mosaic_0001>

<llo_original>
// kernel: unet_down.1
$region0: #{unet_down.1}
  #allocation0 [shape = 'u32[]', space=smem, size = 0x4, offset = 0x4, fixed_abs, tag = 'smem constant byte address 0x4 - core index']
  #allocation1 [shape = 'u32[144,128]{1,0:T(1,128)}', space=vmem, size = 0x12000, scoped, tag = 'internal scratch']
  %s0 = inlined_call_operand.vmem [shape: bf16[2,2,8,16], index: 0, kind: input, shape index: {}]
  %s1 = inlined_call_operand.vmem [shape: bf16[2,2,16,72], index: 1, kind: input, shape index: {}]
  %s2 = inlined_call_operand.vmem [shape: f32[2,8,64], index: 2, kind: output, shape index: {}]
  %s3 = sld [smem:[#allocation0]]
  $region41: #{unet_down.1} parent=0
    _
  %s5 = ssub.s32 1, %s3
  %s6 = scalar_select 0, %s5, %s3
  loop: start=0, step=1, limit=4
  $region2: #{unet_down.1} parent=0 // loop_pre_header
    _
  $region3: #{unet_down.1} parent=0 // loop_header
    %s8 = sphi 0, %s12
    %p9 = scmp.ge.s32.totalorder %s8, 4
    %s15 = sphi 0, %s27
    %s16 = sphi 0, %s23
    %s17 = sphi 0, %s15
    %s18 = sphi 0, %s16
    %s19 = sphi 0, %s17
    %s20 = sphi 0, %s18
    %s30 = sphi 0, %s32
    %s33 = sphi 0, %s30
    %s34 = sphi 0, %s33
    %s50 = sphi 0, %s34
    %s56 = sphi 0, %s58
    %s59 = sphi 0, %s56
    %s60 = sphi 0, %s59
    %s76 = sphi 0, %s60
    %s84 = sphi 0, %s86
    %s87 = sphi 0, %s84
    %s88 = sphi 0, %s87
    %s104 = sphi 0, %s88
  $region4: #{unet_down.1} parent=0 // loop_header_branch
    %11 = sbr.rel (%p9) target = $region8
  $region5: #{unet_down.1} parent=0 // loop_body
    %s13 = ssub.s32 %s8, 1
    %s14 = ssub.s32 %s8, 2
    %s21 = sadd.s32 1, %s16
    %p22 = scmp.ge.s32.totalorder %s21, 1
    %s23 = scalar_select %p22, 0, %s21
    %s24 = sadd.s32 1, %s15
    %s25 = scalar_select %p22, %s24, %s15
    %p26 = scmp.ge.s32.totalorder %s25, 2
    %s27 = scalar_select %p26, 0, %s25
    %s28 = ssub.s32 %s16, %s23
    %p29 = scmp.eq.s32.totalorder %s28, 0
    %s31 = sadd.s32 %s30, 1
    %s32 = scalar_select %p29, %s30, %s31
    %p35 = pneg %p29
    %p36 = scmp.eq.s32.totalorder %s8, 1
    %p37 = por %p35, %p36
    %p38 = scmp.ne.s32.totalorder %s30, %s33
    %p39 = scmp.eq.s32.totalorder %s8, 0
    %p40 = por %p38, %p39
    %p41 = scmp.ne.s32.totalorder %s30, %s33
    %p42 = scmp.eq.s32.totalorder %s13, 1
    %p43 = por %p41, %p42
    %p44 = scmp.ne.s32.totalorder %s33, %s34
    %p45 = scmp.eq.s32.totalorder %s13, 0
    %p46 = por %p44, %p45
    %p47 = scmp.ne.s32.totalorder %s33, %s34
    %p48 = scmp.eq.s32.totalorder %s14, 1
    %p49 = por %p47, %p48
    %p51 = scmp.ne.s32.totalorder %s34, %s50
    %p52 = scmp.eq.s32.totalorder %s14, 0
    %p53 = por %p51, %p52
    %s54 = ssub.s32 %s15, %s27
    %p55 = scmp.eq.s32.totalorder %s54, 0
    %s57 = sadd.s32 %s56, 1
    %s58 = scalar_select %p55, %s56, %s57
    %p61 = pneg %p55
    %p62 = scmp.eq.s32.totalorder %s8, 1
    %p63 = por %p61, %p62
    %p64 = scmp.ne.s32.totalorder %s56, %s59
    %p65 = scmp.eq.s32.totalorder %s8, 0
    %p66 = por %p64, %p65
    %p67 = scmp.ne.s32.totalorder %s56, %s59
    %p68 = scmp.eq.s32.totalorder %s13, 1
    %p69 = por %p67, %p68
    %p70 = scmp.ne.s32.totalorder %s59, %s60
    %p71 = scmp.eq.s32.totalorder %s13, 0
    %p72 = por %p70, %p71
    %p73 = scmp.ne.s32.totalorder %s59, %s60
    %p74 = scmp.eq.s32.totalorder %s14, 1
    %p75 = por %p73, %p74
    %p77 = scmp.ne.s32.totalorder %s60, %s76
    %p78 = scmp.eq.s32.totalorder %s14, 0
    %p79 = por %p77, %p78
    %s80 = ssub.s32 %s15, %s27
    %s81 = ssub.s32 %s16, %s23
    %s82 = sor.u32 %s80, %s81
    %p83 = scmp.eq.s32.totalorder %s82, 0
    %s85 = sadd.s32 %s84, 1
    %s86 = scalar_select %p83, %s84, %s85
    %p89 = pneg %p83
    %p90 = scmp.eq.s32.totalorder %s8, 1
    %p91 = por %p89, %p90
    %p92 = scmp.ne.s32.totalorder %s84, %s87
    %p93 = scmp.eq.s32.totalorder %s8, 0
    %p94 = por %p92, %p93
    %p95 = scmp.ne.s32.totalorder %s84, %s87
    %p96 = scmp.eq.s32.totalorder %s13, 1
    %p97 = por %p95, %p96
    %p98 = scmp.ne.s32.totalorder %s87, %s88
    %p99 = scmp.eq.s32.totalorder %s13, 0
    %p100 = por %p98, %p99
    %p101 = scmp.ne.s32.totalorder %s87, %s88
    %p102 = scmp.eq.s32.totalorder %s14, 1
    %p103 = por %p101, %p102
    %p105 = scmp.ne.s32.totalorder %s88, %s104
    %p106 = scmp.eq.s32.totalorder %s14, 0
    %p107 = por %p105, %p106
    %p108 = scmp.le.s32.totalorder 1, %s8
    %p109 = scmp.lt.s32.totalorder %s8, 3
    %p110 = pnand %p108, %p109
    %p111 = pneg %p110
    // Predicated region
    $region9: #{unet_down.1} parent=5 // pred_check
      _
    $region10: #{unet_down.1} parent=5 // pred_check_branch
      %113 = sbr.rel (%p110) target = $region12
    $region11: #{unet_down.1} parent=5 // pred_region
      %s114 = ssub.s32 %s8, 1
      // Predicated region
      $region13: #{unet_down.1} parent=11 // pred_check
        %p115 = pneg %p46
      $region14: #{unet_down.1} parent=11 // pred_check_branch
        %117 = sbr.rel (%p115) target = $region16
      $region15: #{unet_down.1} parent=11 // pred_region
        %p118 = scmp.lt.s32.totalorder %s18, 0
        %s119 = scalar_select %p118, %s18, 0
        %s120 = smul.addr %s119, 4
        %s121 = scalar_lea.vmem %s0, %s120
      $region16: #{unet_down.1} parent=11 // pred_fallthru
        _
    $region12: #{unet_down.1} parent=5 // pred_fallthru
      _
    %p122 = scmp.lt.s32.totalorder %s8, 2
    // Predicated region
    $region17: #{unet_down.1} parent=5 // pred_check
      %p123 = pneg %p122
    $region18: #{unet_down.1} parent=5 // pred_check_branch
      %125 = sbr.rel (%p123) target = $region20
    $region19: #{unet_down.1} parent=5 // pred_region
      // Predicated region
      $region21: #{unet_down.1} parent=19 // pred_check
        %p126 = pneg %p66
      $region22: #{unet_down.1} parent=19 // pred_check_branch
        %128 = sbr.rel (%p126) target = $region24
      $region23: #{unet_down.1} parent=19 // pred_region
        %p129 = scmp.lt.s32.totalorder %s15, 1
        %s130 = scalar_select %p129, %s15, 1
        %s131 = smul.addr %s130, 4
        %s132 = smul.addr %s131, 4
        %s133 = scalar_lea.vmem %s1, %s132
      $region24: #{unet_down.1} parent=19 // pred_fallthru
        _
    $region20: #{unet_down.1} parent=5 // pred_fallthru
      _
    %p134 = scmp.le.s32.totalorder 1, %s8
    %p135 = scmp.lt.s32.totalorder %s8, 3
    %p136 = pnand %p134, %p135
    %p137 = pneg %p136
    // Predicated region
    $region25: #{unet_down.1} parent=5 // pred_check
      _
    $region26: #{unet_down.1} parent=5 // pred_check_branch
      %139 = sbr.rel (%p136) target = $region28
    $region27: #{unet_down.1} parent=5 // pred_region
      %s140 = ssub.s32 %s8, 1
      %p141 = scmp.lt.s32.totalorder %s18, 0
      %s142 = scalar_select %p141, %s18, 0
      %s143 = smul.addr %s142, 4
      %s144 = scalar_lea.vmem %s0, %s143
      %p145 = pneg %p46
      %p146 = pneg %p43
      %p147 = scmp.lt.s32.totalorder %s17, 1
      %s148 = scalar_select %p147, %s17, 1
      %s149 = smul.addr %s148, 4
      %s150 = smul.addr %s149, 4
      %s151 = scalar_lea.vmem %s1, %s150
      %p152 = pneg %p72
      %p153 = pneg %p69
      %p154 = pneg %p100
      %p155 = pneg %p97
      %p156 = scmp.lt.s32.totalorder %s17, 1
      %s157 = scalar_select %p156, %s17, 1
      %p158 = scmp.lt.s32.totalorder %s18, 0
      %s159 = scalar_select %p158, %s18, 0
      %s160 = sadd.s32 %s159, %s157
      %s161 = smul.addr %s160, 8
      %s162 = scalar_lea.vmem %s2, %s161
      %p163 = scmp.lt.s32.totalorder %s18, 0
      %s164 = scalar_select %p163, %s18, 0
      %s165 = smul.addr %s164, 4
      %s166 = scalar_lea.vmem %s0, %s165
      %p167 = scmp.lt.s32.totalorder %s17, 1
      %s168 = scalar_select %p167, %s17, 1
      %s169 = smul.addr %s168, 4
      %s170 = smul.addr %s169, 4
      %s171 = scalar_lea.vmem %s1, %s170
      %p172 = scmp.lt.s32.totalorder %s17, 1
      %s173 = scalar_select %p172, %s17, 1
      %p174 = scmp.lt.s32.totalorder %s18, 0
      %s175 = scalar_select %p174, %s18, 0
      %s176 = sadd.s32 %s175, %s173
      %s177 = smul.addr %s176, 8
      %s178 = scalar_lea.vmem %s2, %s177
      %v180 = vld [vmem:[%s166] sm:$0xf]
      %v181 = vld [vmem:[%s171] sm:$0xf]
      %v182 = vld [vmem:[%s171 + $0x4] sm:$0xf]
      %v185 = vunpack.c.l.b16 %v181
      %v186 = vunpack.c.l.b16 %v182
      %v187 = vpack.c.b16 %v186, %v185
      %vm189 = vcmask 130048
      %v191 = vsel %vm189, %v180, 0
      %193 = vmatprep.subr.bf16.mxu0 0
      %194 = vmatpush1.bf16.msra.mxu0 %v187
      %195 = vmatprep.subr.bf16.mxu0 0
      %196 = vmatpush1.bf16.msra.mxu0 0
      %197 = vmatprep.subr.bf16.mxu0 0
      %198 = vmatpush1.bf16.msra.mxu0 0
      %199 = vmatprep.subr.bf16.mxu0 0
      %200 = vmatpush1.bf16.msra.mxu0 0
      %201 = vmatprep.subr.bf16.mxu0 0
      %202 = vmatpush1.bf16.msra.mxu0 0
      %203 = vmatprep.subr.bf16.mxu0 0
      %204 = vmatpush1.bf16.msra.mxu0 0
      %205 = vmatprep.subr.bf16.mxu0 0
      %206 = vmatpush1.bf16.msra.mxu0 0
      %207 = vmatprep.subr.bf16.mxu0 0
      %208 = vmatpush1.bf16.msra.mxu0 0
      %209 = vmatprep.subr.bf16.mxu0 0
      %210 = vmatpush1.bf16.msra.mxu0 0
      %211 = vmatprep.subr.bf16.mxu0 0
      %212 = vmatpush1.bf16.msra.mxu0 0
      %213 = vmatprep.subr.bf16.mxu0 0
      %214 = vmatpush1.bf16.msra.mxu0 0
      %215 = vmatprep.subr.bf16.mxu0 0
      %216 = vmatpush1.bf16.msra.mxu0 0
      %217 = vmatprep.subr.bf16.mxu0 0
      %218 = vmatpush1.bf16.msra.mxu0 0
      %219 = vmatprep.subr.bf16.mxu0 0
      %220 = vmatpush1.bf16.msra.mxu0 0
      %221 = vmatprep.subr.bf16.mxu0 0
      %222 = vmatpush1.bf16.msra.mxu0 0
      %223 = vmatprep.subr.bf16.mxu0 0
      %224 = vmatpush1.bf16.msra.mxu0 0
      %225 = vmatprep.mubr.bf16.mxu0 0
      %226 = vmatmul.mubr.bf16.gmra.mrb[0].mxu0 %v191
      %v227 = vpop.f32.mrb[0].mxu0
      %v228 = vadd.f32 0.0, %v227
      %v229 = vpop.f32.mrb[0].mxu0
      %v230 = vpop.f32.mrb[0].mxu0
      %v231 = vpop.f32.mrb[0].mxu0
      %232 = vdwg.mxu0
      %vm233 = vcmask 523264
      %234 = vst.msk [vmem:[%s178] sm:$0xff] %vm233, %v228
      %s235 = scalar_lea.vmem %s166, 4
      %v236 = vld [vmem:[%s235] sm:$0xf]
      %s237 = scalar_lea.vmem %s171, 8
      %v238 = vld [vmem:[%s237] sm:$0xf]
      %v239 = vld [vmem:[%s237 + $0x4] sm:$0xf]
      %v242 = vunpack.c.l.b16 %v238
      %v243 = vunpack.c.l.b16 %v239
      %v244 = vpack.c.b16 %v243, %v242
      %v247 = vsel %vm189, %v236, 0
      %249 = vmatprep.subr.bf16.mxu0 0
      %250 = vmatpush1.bf16.msra.mxu0 %v244
      %251 = vmatprep.subr.bf16.mxu0 0
      %252 = vmatpush1.bf16.msra.mxu0 0
      %253 = vmatprep.subr.bf16.mxu0 0
      %254 = vmatpush1.bf16.msra.mxu0 0
      %255 = vmatprep.subr.bf16.mxu0 0
      %256 = vmatpush1.bf16.msra.mxu0 0
      %257 = vmatprep.subr.bf16.mxu0 0
      %258 = vmatpush1.bf16.msra.mxu0 0
      %259 = vmatprep.subr.bf16.mxu0 0
      %260 = vmatpush1.bf16.msra.mxu0 0
      %261 = vmatprep.subr.bf16.mxu0 0
      %262 = vmatpush1.bf16.msra.mxu0 0
      %263 = vmatprep.subr.bf16.mxu0 0
      %264 = vmatpush1.bf16.msra.mxu0 0
      %265 = vmatprep.subr.bf16.mxu0 0
      %266 = vmatpush1.bf16.msra.mxu0 0
      %267 = vmatprep.subr.bf16.mxu0 0
      %268 = vmatpush1.bf16.msra.mxu0 0
      %269 = vmatprep.subr.bf16.mxu0 0
      %270 = vmatpush1.bf16.msra.mxu0 0
      %271 = vmatprep.subr.bf16.mxu0 0
      %272 = vmatpush1.bf16.msra.mxu0 0
      %273 = vmatprep.subr.bf16.mxu0 0
      %274 = vmatpush1.bf16.msra.mxu0 0
      %275 = vmatprep.subr.bf16.mxu0 0
      %276 = vmatpush1.bf16.msra.mxu0 0
      %277 = vmatprep.subr.bf16.mxu0 0
      %278 = vmatpush1.bf16.msra.mxu0 0
      %279 = vmatprep.subr.bf16.mxu0 0
      %280 = vmatpush1.bf16.msra.mxu0 0
      %281 = vmatprep.mubr.bf16.mxu0 0
      %282 = vmatmul.mubr.bf16.gmra.mrb[0].mxu0 %v247
      %v283 = vpop.f32.mrb[0].mxu0
      %v284 = vadd.f32 0.0, %v283
      %v285 = vpop.f32.mrb[0].mxu0
      %v286 = vpop.f32.mrb[0].mxu0
      %v287 = vpop.f32.mrb[0].mxu0
      %288 = vdwg.mxu0
      %v289 = vld [vmem:[%s178] sm:$0xff]
      %v290 = vadd.f32 %v289, %v284
      %291 = vst.msk [vmem:[%s178] sm:$0xff] %vm233, %v290
      %s292 = scalar_lea.vmem %s166, 8
      %v293 = vld [vmem:[%s292] sm:$0xf]
      %v294 = vld [vmem:[%s171] sm:$0xf]
      %v295 = vld [vmem:[%s171 + $0x4] sm:$0xf]
      %v298 = vunpack.c.l.b16 %v294
      %v299 = vunpack.c.l.b16 %v295
      %v300 = vpack.c.b16 %v299, %v298
      %301 = vrot.lane.b32.xlu0 %v300, 120
      %v302 = vpop.permute.xlu0 %301
      %v305 = vsel %vm189, %v293, 0
      %307 = vmatprep.subr.bf16.mxu0 0
      %308 = vmatpush1.bf16.msra.mxu0 %v302
      %309 = vmatprep.subr.bf16.mxu0 0
      %310 = vmatpush1.bf16.msra.mxu0 0
      %311 = vmatprep.subr.bf16.mxu0 0
      %312 = vmatpush1.bf16.msra.mxu0 0
      %313 = vmatprep.subr.bf16.mxu0 0
      %314 = vmatpush1.bf16.msra.mxu0 0
      %315 = vmatprep.subr.bf16.mxu0 0
      %316 = vmatpush1.bf16.msra.mxu0 0
      %317 = vmatprep.subr.bf16.mxu0 0
      %318 = vmatpush1.bf16.msra.mxu0 0
      %319 = vmatprep.subr.bf16.mxu0 0
      %320 = vmatpush1.bf16.msra.mxu0 0
      %321 = vmatprep.subr.bf16.mxu0 0
      %322 = vmatpush1.bf16.msra.mxu0 0
      %323 = vmatprep.subr.bf16.mxu0 0
      %324 = vmatpush1.bf16.msra.mxu0 0
      %325 = vmatprep.subr.bf16.mxu0 0
      %326 = vmatpush1.bf16.msra.mxu0 0
      %327 = vmatprep.subr.bf16.mxu0 0
      %328 = vmatpush1.bf16.msra.mxu0 0
      %329 = vmatprep.subr.bf16.mxu0 0
      %330 = vmatpush1.bf16.msra.mxu0 0
      %331 = vmatprep.subr.bf16.mxu0 0
      %332 = vmatpush1.bf16.msra.mxu0 0
      %333 = vmatprep.subr.bf16.mxu0 0
      %334 = vmatpush1.bf16.msra.mxu0 0
      %335 = vmatprep.subr.bf16.mxu0 0
      %336 = vmatpush1.bf16.msra.mxu0 0
      %337 = vmatprep.subr.bf16.mxu0 0
      %338 = vmatpush1.bf16.msra.mxu0 0
      %339 = vmatprep.mubr.bf16.mxu0 0
      %340 = vmatmul.mubr.bf16.gmra.mrb[0].mxu0 %v305
      %v341 = vpop.f32.mrb[0].mxu0
      %v342 = vadd.f32 0.0, %v341
      %v343 = vpop.f32.mrb[0].mxu0
      %v344 = vpop.f32.mrb[0].mxu0
      %v345 = vpop.f32.mrb[0].mxu0
      %346 = vdwg.mxu0
      %v347 = vld [vmem:[%s178] sm:$0xff]
      %v348 = vadd.f32 %v347, %v342
      %349 = vst.msk [vmem:[%s178] sm:$0xff] %vm233, %v348
      %s350 = scalar_lea.vmem %s166, 12
      %v351 = vld [vmem:[%s350] sm:$0xf]
      %v352 = vld [vmem:[%s237] sm:$0xf]
      %v353 = vld [vmem:[%s237 + $0x4] sm:$0xf]
      %v356 = vunpack.c.l.b16 %v352
      %v357 = vunpack.c.l.b16 %v353
      %v358 = vpack.c.b16 %v357, %v356
      %359 = vrot.lane.b32.xlu0 %v358, 120
      %v360 = vpop.permute.xlu0 %359
      %v363 = vsel %vm189, %v351, 0
      %365 = vmatprep.subr.bf16.mxu0 0
      %366 = vmatpush1.bf16.msra.mxu0 %v360
      %367 = vmatprep.subr.bf16.mxu0 0
      %368 = vmatpush1.bf16.msra.mxu0 0
      %369 = vmatprep.subr.bf16.mxu0 0
      %370 = vmatpush1.bf16.msra.mxu0 0
      %371 = vmatprep.subr.bf16.mxu0 0
      %372 = vmatpush1.bf16.msra.mxu0 0
      %373 = vmatprep.subr.bf16.mxu0 0
      %374 = vmatpush1.bf16.msra.mxu0 0
      %375 = vmatprep.subr.bf16.mxu0 0
      %376 = vmatpush1.bf16.msra.mxu0 0
      %377 = vmatprep.subr.bf16.mxu0 0
      %378 = vmatpush1.bf16.msra.mxu0 0
      %379 = vmatprep.subr.bf16.mxu0 0
      %380 = vmatpush1.bf16.msra.mxu0 0
      %381 = vmatprep.subr.bf16.mxu0 0
      %382 = vmatpush1.bf16.msra.mxu0 0
      %383 = vmatprep.subr.bf16.mxu0 0
      %384 = vmatpush1.bf16.msra.mxu0 0
      %385 = vmatprep.subr.bf16.mxu0 0
      %386 = vmatpush1.bf16.msra.mxu0 0
      %387 = vmatprep.subr.bf16.mxu0 0
      %388 = vmatpush1.bf16.msra.mxu0 0
      %389 = vmatprep.subr.bf16.mxu0 0
      %390 = vmatpush1.bf16.msra.mxu0 0
      %391 = vmatprep.subr.bf16.mxu0 0
      %392 = vmatpush1.bf16.msra.mxu0 0
      %393 = vmatprep.subr.bf16.mxu0 0
      %394 = vmatpush1.bf16.msra.mxu0 0
      %395 = vmatprep.subr.bf16.mxu0 0
      %396 = vmatpush1.bf16.msra.mxu0 0
      %397 = vmatprep.mubr.bf16.mxu0 0
      %398 = vmatmul.mubr.bf16.gmra.mrb[0].mxu0 %v363
      %v399 = vpop.f32.mrb[0].mxu0
      %v400 = vadd.f32 0.0, %v399
      %v401 = vpop.f32.mrb[0].mxu0
      %v402 = vpop.f32.mrb[0].mxu0
      %v403 = vpop.f32.mrb[0].mxu0
      %404 = vdwg.mxu0
      %v405 = vld [vmem:[%s178] sm:$0xff]
      %v406 = vadd.f32 %v405, %v400
      %407 = vst.msk [vmem:[%s178] sm:$0xff] %vm233, %v406
      %v408 = vld [vmem:[%s178] sm:$0xff]
      %v409 = vsel %vm233, %v408, 0.0
      %410 = vadd.xlane.f32.xlu0 %v409
      %v411 = vpop.xlane.xlu0 %410
      %v412 = vrcp.pop 64.0
      %v413 = vmul.f32 %v411, %v412
      %v414 = vsub.f32 %v408, %v413
      %v415 = vmul.f32 %v414, %v414
      %v416 = vsel %vm233, %v415, 0.0
      %417 = vadd.xlane.f32.xlu0 %v416
      %v418 = vpop.xlane.xlu0 %417
      %v419 = vmul.f32 %v418, %v412
      %v420 = vadd.f32 %v419, 1e-05
      %v421 = vrsqrt.pop %v420
      %v422 = vmul.f32 %v414, %v421
      %vm423 = vcmp.gt.f32.partialorder %v422, 0.0
      %v424 = vmul.f32 %v422, 0.2
      %v425 = vsel %vm423, %v422, %v424
      %426 = vst.msk [vmem:[%s178] sm:$0xff] %vm233, %v425
      %p427 = scmp.lt.s32.totalorder %s17, 1
      %s428 = scalar_select %p427, %s17, 1
      %p429 = scmp.lt.s32.totalorder %s18, 0
      %s430 = scalar_select %p429, %s18, 0
      %s431 = sadd.s32 %s430, %s428
      %s432 = smul.addr %s431, 8
      %s433 = scalar_lea.vmem %s2, %s432
      // Predicated region
      $region29: #{unet_down.1} parent=27 // pred_check
        %p434 = pneg %p97
      $region30: #{unet_down.1} parent=27 // pred_check_branch
        %436 = sbr.rel (%p434) target = $region32
      $region31: #{unet_down.1} parent=27 // pred_region
        _
      $region32: #{unet_down.1} parent=27 // pred_fallthru
        _
    $region28: #{unet_down.1} parent=5 // pred_fallthru
      _
    %p437 = scmp.le.s32.totalorder 2, %s8
    // Predicated region
    $region33: #{unet_down.1} parent=5 // pred_check
      %p438 = pneg %p437
    $region34: #{unet_down.1} parent=5 // pred_check_branch
      %440 = sbr.rel (%p438) target = $region36
    $region35: #{unet_down.1} parent=5 // pred_region
      %s441 = ssub.s32 %s8, 2
      // Predicated region
      $region37: #{unet_down.1} parent=35 // pred_check
        %p442 = pneg %p103
      $region38: #{unet_down.1} parent=35 // pred_check_branch
        %444 = sbr.rel (%p442) target = $region40
      $region39: #{unet_down.1} parent=35 // pred_region
        %p445 = scmp.lt.s32.totalorder %s19, 1
        %s446 = scalar_select %p445, %s19, 1
        %p447 = scmp.lt.s32.totalorder %s20, 0
        %s448 = scalar_select %p447, %s20, 0
        %s449 = sadd.s32 %s448, %s446
        %s450 = smul.addr %s449, 8
        %s451 = scalar_lea.vmem %s2, %s450
      $region40: #{unet_down.1} parent=35 // pred_fallthru
        _
    $region36: #{unet_down.1} parent=5 // pred_fallthru
      _
  $region6: #{unet_down.1} parent=0 // loop_footer
    %s12 = sadd.s32 1, %s8
  $region7: #{unet_down.1} parent=0 // loop_footer_branch
    %7 = sbr.rel target = $region3
  $region8: #{unet_down.1} parent=0 // loop_exit
    _

</llo_original>
